<compile_context>
chip_gen: v6e
topology: v6e:2x2x1
jax: 0.10.0
libtpu: 0.0.40
codegen_flags: <defaults>
</compile_context>

<pallas_src>
import jax
import jax.numpy as jnp
from jax.experimental import pallas as pl
from jax.experimental.pallas import tpu as pltpu


def critic_kernel(s_ref, a_ref, w1s_ref, w1a_ref, b1_ref, w2_ref, b2_ref,
                  wq_ref, bq_ref, q_ref):
    """One batch tile (tm rows): fused fc1 + relu + fc2 + relu + q."""
    # fc1 on the (never materialized) concat([state, action]) as two matmuls.
    # Operands stay f32: K is only S + A, so this is <10% of the MXU FLOPs
    # and keeping it full precision removes the largest rounding source.
    h1 = jnp.dot(s_ref[...], w1s_ref[...], preferred_element_type=jnp.float32)
    h1 = h1 + jnp.dot(a_ref[...], w1a_ref[...],
                      preferred_element_type=jnp.float32)
    h1 = jnp.maximum(h1 + b1_ref[...], 0.0)

    # fc2 + relu: activations cast to the (pre-cast) weight dtype for the MXU,
    # accumulation in f32.
    h2 = jnp.dot(h1.astype(w2_ref.dtype), w2_ref[...],
                 preferred_element_type=jnp.float32)
    h2 = jnp.maximum(h2 + b2_ref[...], 0.0)

    # Final layer has N=1: VPU multiply + row reduction (XLU) instead of a
    # 1-lane MXU matmul. wq is a (1, fc2) f32 row; bq is an SMEM scalar.
    q = jnp.sum(h2 * wq_ref[...], axis=-1, keepdims=True) + bq_ref[0]
    q_ref[...] = q.astype(q_ref.dtype)


def _round_up(x, m):
    return ((x + m - 1) // m) * m


def prepare_critic_params(params, input_dims, *, compute_dtype=jnp.bfloat16):
    """One-time weight prep, hoisted out of the forward hot path.

    params = (w1, b1, w2, b2, wq, bq) with weights as [in_features, out_features].
    Returns the tuple the kernel consumes: fc1 weights pre-split at the
    state/action boundary (f32), fc2 weight pre-cast to `compute_dtype`,
    biases / wq as f32 rows, bq as a 1-element f32 array (goes to SMEM).
    """
    w1, b1, w2, b2, wq, bq = params
    S = input_dims[0]
    H1 = w1.shape[1]
    H2 = w2.shape[1]
    return (
        jnp.asarray(w1[:S], jnp.float32),              # w1s: (S, H1)
        jnp.asarray(w1[S:], jnp.float32),              # w1a: (A, H1)
        jnp.asarray(b1, jnp.float32).reshape(1, H1),   # b1
        jnp.asarray(w2, compute_dtype),                # w2: (H1, H2)
        jnp.asarray(b2, jnp.float32).reshape(1, H2),   # b2
        jnp.asarray(wq, jnp.float32).reshape(1, H2),   # wq as a row (VPU tail)
        jnp.asarray(bq, jnp.float32).reshape(1),       # bq scalar (SMEM)
    )


def critic_forward(state, action, prepped, *, tm_max=1024):
    """state: (B, input_dims), action: (B, n_actions) -> q: (B, 1)."""
    w1s, w1a, b1, w2, b2, wq, bq = prepped
    B, S = state.shape
    A = action.shape[1]
    H1 = w1s.shape[1]
    H2 = w2.shape[1]

    # Batch tile: as large as possible (per-grid-step overhead dominates at
    # small tiles), but keep >= 2 grid steps when B allows it so the
    # ("parallel",) axis feeds both v7x TensorCores.
    tm = max(8, min(tm_max, _round_up(-(-B // 2), 8)))
    b_pad = _round_up(B, tm)
    if b_pad != B:
        pad = b_pad - B
        # Padded rows produce junk q (relu(b1) propagates) and are sliced off.
        state = jnp.pad(state, ((0, pad), (0, 0)))
        action = jnp.pad(action, ((0, pad), (0, 0)))
    num_tiles = b_pad // tm

    batch_spec = lambda feat: pl.BlockSpec((tm, feat), lambda i: (i, 0))
    whole = lambda r, c: pl.BlockSpec((r, c), lambda i: (0, 0))  # grid-invariant

    q = pl.pallas_call(
        critic_kernel,
        out_shape=jax.ShapeDtypeStruct((b_pad, 1), jnp.float32),
        grid=(num_tiles,),
        in_specs=[
            batch_spec(S),                                       # state tile
            batch_spec(A),                                       # action tile
            whole(S, H1),                                        # w1[:S]  (f32)
            whole(A, H1),                                        # w1[S:]  (f32)
            whole(1, H1),                                        # b1
            whole(H1, H2),                                       # w2 (bf16/f32)
            whole(1, H2),                                        # b2
            whole(1, H2),                                        # wq row
            pl.BlockSpec(memory_space=pltpu.MemorySpace.SMEM),   # bq scalar
        ],
        out_specs=pl.BlockSpec((tm, 1), lambda i: (i, 0)),
        compiler_params=pltpu.CompilerParams(
            dimension_semantics=("parallel",),   # shard batch across TCs (v7x)
            vmem_limit_bytes=32 << 20),          # headroom over v5e's 16 MiB default
    )(state, action, w1s, w1a, b1, w2, b2, wq, bq)

    return q[:B]


def init_linear(key, fan_in, fan_out):
    # Deterministic init mimicking torch.nn.Linear default:
    # U(-1/sqrt(fan_in), 1/sqrt(fan_in)) for both weight and bias.
    kw, kb = jax.random.split(key)
    bound = 1.0 / jnp.sqrt(jnp.float32(fan_in))
    w = jax.random.uniform(kw, (fan_in, fan_out), jnp.float32, -bound, bound)
    b = jax.random.uniform(kb, (1, fan_out), jnp.float32, -bound, bound)
    return w, b


if __name__ == "__main__":
    # Shapes consistent with the module (fc1/fc2 at their 256 defaults).
    batch = 256
    input_dims = (16,)      # observation dimension
    n_actions = 8
    fc1_dims = 256
    fc2_dims = 256

    key = jax.random.PRNGKey(0)
    k_s, k_a, k1, k2, k3 = jax.random.split(key, 5)

    state = jax.random.normal(k_s, (batch, input_dims[0]), jnp.float32)
    action = jax.random.normal(k_a, (batch, n_actions), jnp.float32)

    w1, b1 = init_linear(k1, input_dims[0] + n_actions, fc1_dims)
    w2, b2 = init_linear(k2, fc1_dims, fc2_dims)
    wq, bq = init_linear(k3, fc2_dims, 1)
    params = (w1, b1, w2, b2, wq, bq)

    # Pure-JAX reference (f32, same math as the PyTorch forward).
    x = jnp.concatenate([state, action], axis=1)
    h1 = jnp.maximum(x @ w1 + b1, 0.0)
    h2 = jnp.maximum(h1 @ w2 + b2, 0.0)
    q_ref = h2 @ wq + bq

    forward = jax.jit(critic_forward)

    # f32 end-to-end: tight numerical check.
    pp_f32 = prepare_critic_params(params, input_dims, compute_dtype=jnp.float32)
    q_f32 = jax.block_until_ready(forward(state, action, pp_f32))
    assert q_f32.shape == (batch, 1)
    assert jnp.allclose(q_f32, q_ref, atol=1e-5, rtol=1e-5)

    # Production path: bf16 fc2 operands, f32 fc1 + f32 accumulation.
    pp_bf16 = prepare_critic_params(params, input_dims, compute_dtype=jnp.bfloat16)
    q_bf16 = jax.block_until_ready(forward(state, action, pp_bf16))
    assert q_bf16.shape == (batch, 1)
    assert jnp.allclose(q_bf16, q_ref, atol=2e-2, rtol=2e-2)

    # Ragged batch: exercises padding + 2-tile grid + output slicing.
    rb = 77
    q_rag = jax.block_until_ready(forward(state[:rb], action[:rb], pp_bf16))
    assert q_rag.shape == (rb, 1)
    assert jnp.allclose(q_rag, q_ref[:rb], atol=2e-2, rtol=2e-2)

    print("KERNEL_OK")
</pallas_src>

<mosaic_0001>
module attributes {stable_mosaic.version = 11 : i64} {
  func.func @critic_kernel(%arg0: i32, %arg1: memref<128x16xf32, #tpu.memory_space<vmem>>, %arg2: memref<128x8xf32, #tpu.memory_space<vmem>>, %arg3: memref<16x256xf32, #tpu.memory_space<vmem>>, %arg4: memref<8x256xf32, #tpu.memory_space<vmem>>, %arg5: memref<1x256xf32, #tpu.memory_space<vmem>>, %arg6: memref<256x256xf32, #tpu.memory_space<vmem>>, %arg7: memref<1x256xf32, #tpu.memory_space<vmem>>, %arg8: memref<1x256xf32, #tpu.memory_space<vmem>>, %arg9: memref<1xf32, #tpu.memory_space<smem>>, %arg10: memref<128x1xf32, #tpu.memory_space<vmem>>) attributes {dimension_semantics = [#tpu.dimension_semantics<parallel>], iteration_bounds = array<i64: 2>, scalar_prefetch = 0 : i64, scratch_operands = 0 : i64, tpu.core_type = #tpu.core_type<tc>, window_params = [{transform_indices = @transform_0, window_bounds = array<i64: 128, 16>}, {transform_indices = @transform_1, window_bounds = array<i64: 128, 8>}, {pipeline_mode = #tpu.pipeline_mode<synchronous>, transform_indices = @transform_2, window_bounds = array<i64: 16, 256>}, {pipeline_mode = #tpu.pipeline_mode<synchronous>, transform_indices = @transform_3, window_bounds = array<i64: 8, 256>}, {pipeline_mode = #tpu.pipeline_mode<synchronous>, transform_indices = @transform_4, window_bounds = array<i64: 1, 256>}, {pipeline_mode = #tpu.pipeline_mode<synchronous>, transform_indices = @transform_5, window_bounds = array<i64: 256, 256>}, {pipeline_mode = #tpu.pipeline_mode<synchronous>, transform_indices = @transform_6, window_bounds = array<i64: 1, 256>}, {pipeline_mode = #tpu.pipeline_mode<synchronous>, transform_indices = @transform_7, window_bounds = array<i64: 1, 256>}, {transform_indices = @transform_8, window_bounds = array<i64: 1>}, {transform_indices = @transform_9, window_bounds = array<i64: 128, 1>}]} {
    %c0 = arith.constant 0 : index
    %c0_0 = arith.constant 0 : index
    %0 = vector.load %arg1[%c0, %c0_0] : memref<128x16xf32, #tpu.memory_space<vmem>>, vector<128x16xf32>
    %c0_1 = arith.constant 0 : index
    %c0_2 = arith.constant 0 : index
    %1 = vector.load %arg3[%c0_1, %c0_2] : memref<16x256xf32, #tpu.memory_space<vmem>>, vector<16x256xf32>
    %cst = arith.constant dense<0.000000e+00> : vector<128x256xf32>
    %2 = tpu.matmul %0, %1, %cst {dimension_numbers = #tpu.dot_dimension_numbers<[1], [0], [0], [1], [0, 0, 1, 1], [], []>} : vector<128x16xf32>, vector<16x256xf32>, vector<128x256xf32> -> vector<128x256xf32>
    %c0_3 = arith.constant 0 : index
    %c0_4 = arith.constant 0 : index
    %3 = vector.load %arg2[%c0_3, %c0_4] : memref<128x8xf32, #tpu.memory_space<vmem>>, vector<128x8xf32>
    %c0_5 = arith.constant 0 : index
    %c0_6 = arith.constant 0 : index
    %4 = vector.load %arg4[%c0_5, %c0_6] : memref<8x256xf32, #tpu.memory_space<vmem>>, vector<8x256xf32>
    %cst_7 = arith.constant dense<0.000000e+00> : vector<128x256xf32>
    %5 = tpu.matmul %3, %4, %cst_7 {dimension_numbers = #tpu.dot_dimension_numbers<[1], [0], [0], [1], [0, 0, 1, 1], [], []>} : vector<128x8xf32>, vector<8x256xf32>, vector<128x256xf32> -> vector<128x256xf32>
    %6 = arith.addf %2, %5 : vector<128x256xf32>
    %c0_8 = arith.constant 0 : index
    %c0_9 = arith.constant 0 : index
    %7 = vector.load %arg5[%c0_8, %c0_9] : memref<1x256xf32, #tpu.memory_space<vmem>>, vector<1x256xf32>
    %8 = vector.broadcast %7 : vector<1x256xf32> to vector<128x256xf32>
    %9 = arith.addf %6, %8 : vector<128x256xf32>
    %cst_10 = arith.constant 0.000000e+00 : f32
    %10 = vector.broadcast %cst_10 : f32 to vector<128x256xf32>
    %11 = arith.maximumf %9, %10 : vector<128x256xf32>
    %c0_11 = arith.constant 0 : index
    %c0_12 = arith.constant 0 : index
    %12 = vector.load %arg6[%c0_11, %c0_12] : memref<256x256xf32, #tpu.memory_space<vmem>>, vector<256x256xf32>
    %cst_13 = arith.constant dense<0.000000e+00> : vector<128x256xf32>
    %13 = tpu.matmul %11, %12, %cst_13 {dimension_numbers = #tpu.dot_dimension_numbers<[1], [0], [0], [1], [0, 0, 1, 1], [], []>} : vector<128x256xf32>, vector<256x256xf32>, vector<128x256xf32> -> vector<128x256xf32>
    %c0_14 = arith.constant 0 : index
    %c0_15 = arith.constant 0 : index
    %14 = vector.load %arg7[%c0_14, %c0_15] : memref<1x256xf32, #tpu.memory_space<vmem>>, vector<1x256xf32>
    %15 = vector.broadcast %14 : vector<1x256xf32> to vector<128x256xf32>
    %16 = arith.addf %13, %15 : vector<128x256xf32>
    %cst_16 = arith.constant 0.000000e+00 : f32
    %17 = vector.broadcast %cst_16 : f32 to vector<128x256xf32>
    %18 = arith.maximumf %16, %17 : vector<128x256xf32>
    %c0_17 = arith.constant 0 : index
    %c0_18 = arith.constant 0 : index
    %19 = vector.load %arg8[%c0_17, %c0_18] : memref<1x256xf32, #tpu.memory_space<vmem>>, vector<1x256xf32>
    %20 = vector.broadcast %19 : vector<1x256xf32> to vector<128x256xf32>
    %21 = arith.mulf %18, %20 : vector<128x256xf32>
    %cst_19 = arith.constant dense<0.000000e+00> : vector<128xf32>
    %22 = vector.multi_reduction <add>, %21, %cst_19 [1] : vector<128x256xf32> to vector<128xf32>
    %23 = vector.shape_cast %22 : vector<128xf32> to vector<128x1xf32>
    %c0_20 = arith.constant 0 : index
    %24 = memref.load %arg9[%c0_20] : memref<1xf32, #tpu.memory_space<smem>>
    %25 = vector.broadcast %24 : f32 to vector<128x1xf32>
    %26 = arith.addf %23, %25 : vector<128x1xf32>
    %c0_21 = arith.constant 0 : index
    %c0_22 = arith.constant 0 : index
    %27 = vector.load %arg10[%c0_21, %c0_22] : memref<128x1xf32, #tpu.memory_space<vmem>>, vector<128x1xf32>
    tpu.vector_store %arg10[%c0_21, %c0_22], %26 {strides = array<i32>} : memref<128x1xf32, #tpu.memory_space<vmem>>, vector<128x1xf32>,
    return
  }
  func.func @transform_0(%arg0: i32) -> (i32, i32) {
    %c0_i32 = arith.constant 0 : i32
    %c0_i32_0 = arith.constant 0 : i32
    return %arg0, %c0_i32 : i32, i32
  }
  func.func @transform_1(%arg0: i32) -> (i32, i32) {
    %c0_i32 = arith.constant 0 : i32
    %c0_i32_0 = arith.constant 0 : i32
    return %arg0, %c0_i32 : i32, i32
  }
  func.func @transform_2(%arg0: i32) -> (i32, i32) {
    %c0_i32 = arith.constant 0 : i32
    %c0_i32_0 = arith.constant 0 : i32
    %c0_i32_1 = arith.constant 0 : i32
    return %c0_i32, %c0_i32_0 : i32, i32
  }
  func.func @transform_3(%arg0: i32) -> (i32, i32) {
    %c0_i32 = arith.constant 0 : i32
    %c0_i32_0 = arith.constant 0 : i32
    %c0_i32_1 = arith.constant 0 : i32
    return %c0_i32, %c0_i32_0 : i32, i32
  }
  func.func @transform_4(%arg0: i32) -> (i32, i32) {
    %c0_i32 = arith.constant 0 : i32
    %c0_i32_0 = arith.constant 0 : i32
    %c0_i32_1 = arith.constant 0 : i32
    return %c0_i32, %c0_i32_0 : i32, i32
  }
  func.func @transform_5(%arg0: i32) -> (i32, i32) {
    %c0_i32 = arith.constant 0 : i32
    %c0_i32_0 = arith.constant 0 : i32
    %c0_i32_1 = arith.constant 0 : i32
    return %c0_i32, %c0_i32_0 : i32, i32
  }
  func.func @transform_6(%arg0: i32) -> (i32, i32) {
    %c0_i32 = arith.constant 0 : i32
    %c0_i32_0 = arith.constant 0 : i32
    %c0_i32_1 = arith.constant 0 : i32
    return %c0_i32, %c0_i32_0 : i32, i32
  }
  func.func @transform_7(%arg0: i32) -> (i32, i32) {
    %c0_i32 = arith.constant 0 : i32
    %c0_i32_0 = arith.constant 0 : i32
    %c0_i32_1 = arith.constant 0 : i32
    return %c0_i32, %c0_i32_0 : i32, i32
  }
  func.func @transform_8(%arg0: i32) -> i32 {
    %c0_i32 = arith.constant 0 : i32
    %c0_i32_0 = arith.constant 0 : i32
    return %c0_i32 : i32
  }
  func.func @transform_9(%arg0: i32) -> (i32, i32) {
    %c0_i32 = arith.constant 0 : i32
    %c0_i32_0 = arith.constant 0 : i32
    return %arg0, %c0_i32 : i32, i32
  }
}

</mosaic_0001>

<llo_original>
// kernel: critic_forward.1
$region0: #{critic_forward.1}
  #allocation0 [shape = 'u32[]', space=smem, size = 0x4, offset = 0x4, fixed_abs, tag = 'smem constant byte address 0x4 - core index']
  #allocation1 [shape = 'u32[144,128]{1,0:T(1,128)}', space=vmem, size = 0x12000, scoped, tag = 'internal scratch']
  #allocation2 [shape = 'f32[1]{0:T(128)S(6)}', space=smem, size = 0x200, scoped, tag = 'scoped memory for critic_forward.1']
  %s0 = inlined_call_operand.vmem [shape: f32[256,16], index: 0, kind: input, shape index: {}]
  %s1 = inlined_call_operand.vmem [shape: f32[256,8], index: 1, kind: input, shape index: {}]
  %s2 = inlined_call_operand.vmem [shape: f32[16,256], index: 2, kind: input, shape index: {}]
  %s3 = inlined_call_operand.vmem [shape: f32[8,256], index: 3, kind: input, shape index: {}]
  %s4 = inlined_call_operand.vmem [shape: f32[1,256], index: 4, kind: input, shape index: {}]
  %s5 = inlined_call_operand.vmem [shape: f32[256,256], index: 5, kind: input, shape index: {}]
  %s6 = inlined_call_operand.vmem [shape: f32[1,256], index: 6, kind: input, shape index: {}]
  %s7 = inlined_call_operand.vmem [shape: f32[1,256], index: 7, kind: input, shape index: {}]
  %s8 = inlined_call_operand.<no memory space> [shape: f32[1], index: 8, kind: input, shape index: {}]
  %s9 = inlined_call_operand.vmem [shape: f32[256,1], index: 9, kind: output, shape index: {}]
  %s10 = sld [smem:[#allocation0]]
  $region69: #{critic_forward.1} parent=0
    _
  %s12 = ssub.s32 1, %s10
  %s13 = scalar_select 0, %s12, %s10
  %14 = sst [smem:[#allocation2]] %s8
  loop: start=0, step=1, limit=4
  $region2: #{critic_forward.1} parent=0 // loop_pre_header
    _
  $region3: #{critic_forward.1} parent=0 // loop_header
    %s16 = sphi 0, %s20
    %p17 = scmp.ge.s32.totalorder %s16, 4
    %s26 = sphi 0, %s28
    %s29 = sphi 0, %s26
    %s30 = sphi 0, %s29
    %s46 = sphi 0, %s30
    %s52 = sphi 0, %s54
    %s55 = sphi 0, %s52
    %s56 = sphi 0, %s55
    %s72 = sphi 0, %s56
    %s76 = sphi 0, %s76
    %s78 = sphi 0, %s76
    %s79 = sphi 0, %s78
    %s93 = sphi 0, %s79
    %s97 = sphi 0, %s97
    %s99 = sphi 0, %s97
    %s100 = sphi 0, %s99
    %s114 = sphi 0, %s100
    %s118 = sphi 0, %s118
    %s120 = sphi 0, %s118
    %s121 = sphi 0, %s120
    %s135 = sphi 0, %s121
    %s139 = sphi 0, %s139
    %s141 = sphi 0, %s139
    %s142 = sphi 0, %s141
    %s156 = sphi 0, %s142
    %s160 = sphi 0, %s160
    %s162 = sphi 0, %s160
    %s163 = sphi 0, %s162
    %s177 = sphi 0, %s163
    %s181 = sphi 0, %s181
    %s183 = sphi 0, %s181
    %s184 = sphi 0, %s183
    %s198 = sphi 0, %s184
    %s202 = sphi 0, %s202
    %s204 = sphi 0, %s202
    %s205 = sphi 0, %s204
    %s219 = sphi 0, %s205
    %s225 = sphi 0, %s227
    %s228 = sphi 0, %s225
    %s229 = sphi 0, %s228
    %s245 = sphi 0, %s229
  $region4: #{critic_forward.1} parent=0 // loop_header_branch
    %19 = sbr.rel (%p17) target = $region8
  $region5: #{critic_forward.1} parent=0 // loop_body
    %s21 = ssub.s32 %s16, 1
    %s22 = ssub.s32 %s16, 2
    %s23 = sadd.s32 %s16, 1
    %s24 = ssub.s32 %s16, %s23
    %p25 = scmp.eq.s32.totalorder %s24, 0
    %s27 = sadd.s32 %s26, 1
    %s28 = scalar_select %p25, %s26, %s27
    %p31 = pneg %p25
    %p32 = scmp.eq.s32.totalorder %s16, 1
    %p33 = por %p31, %p32
    %p34 = scmp.ne.s32.totalorder %s26, %s29
    %p35 = scmp.eq.s32.totalorder %s16, 0
    %p36 = por %p34, %p35
    %p37 = scmp.ne.s32.totalorder %s26, %s29
    %p38 = scmp.eq.s32.totalorder %s21, 1
    %p39 = por %p37, %p38
    %p40 = scmp.ne.s32.totalorder %s29, %s30
    %p41 = scmp.eq.s32.totalorder %s21, 0
    %p42 = por %p40, %p41
    %p43 = scmp.ne.s32.totalorder %s29, %s30
    %p44 = scmp.eq.s32.totalorder %s22, 1
    %p45 = por %p43, %p44
    %p47 = scmp.ne.s32.totalorder %s30, %s46
    %p48 = scmp.eq.s32.totalorder %s22, 0
    %p49 = por %p47, %p48
    %s50 = ssub.s32 %s16, %s23
    %p51 = scmp.eq.s32.totalorder %s50, 0
    %s53 = sadd.s32 %s52, 1
    %s54 = scalar_select %p51, %s52, %s53
    %p57 = pneg %p51
    %p58 = scmp.eq.s32.totalorder %s16, 1
    %p59 = por %p57, %p58
    %p60 = scmp.ne.s32.totalorder %s52, %s55
    %p61 = scmp.eq.s32.totalorder %s16, 0
    %p62 = por %p60, %p61
    %p63 = scmp.ne.s32.totalorder %s52, %s55
    %p64 = scmp.eq.s32.totalorder %s21, 1
    %p65 = por %p63, %p64
    %p66 = scmp.ne.s32.totalorder %s55, %s56
    %p67 = scmp.eq.s32.totalorder %s21, 0
    %p68 = por %p66, %p67
    %p69 = scmp.ne.s32.totalorder %s55, %s56
    %p70 = scmp.eq.s32.totalorder %s22, 1
    %p71 = por %p69, %p70
    %p73 = scmp.ne.s32.totalorder %s56, %s72
    %p74 = scmp.eq.s32.totalorder %s22, 0
    %p75 = por %p73, %p74
    %s77 = sadd.s32 %s76, 1
    %p80 = scmp.eq.s32.totalorder %s16, 1
    %p81 = scmp.ne.s32.totalorder %s76, %s78
    %p82 = scmp.eq.s32.totalorder %s16, 0
    %p83 = por %p81, %p82
    %p84 = scmp.ne.s32.totalorder %s76, %s78
    %p85 = scmp.eq.s32.totalorder %s21, 1
    %p86 = por %p84, %p85
    %p87 = scmp.ne.s32.totalorder %s78, %s79
    %p88 = scmp.eq.s32.totalorder %s21, 0
    %p89 = por %p87, %p88
    %p90 = scmp.ne.s32.totalorder %s78, %s79
    %p91 = scmp.eq.s32.totalorder %s22, 1
    %p92 = por %p90, %p91
    %p94 = scmp.ne.s32.totalorder %s79, %s93
    %p95 = scmp.eq.s32.totalorder %s22, 0
    %p96 = por %p94, %p95
    %s98 = sadd.s32 %s97, 1
    %p101 = scmp.eq.s32.totalorder %s16, 1
    %p102 = scmp.ne.s32.totalorder %s97, %s99
    %p103 = scmp.eq.s32.totalorder %s16, 0
    %p104 = por %p102, %p103
    %p105 = scmp.ne.s32.totalorder %s97, %s99
    %p106 = scmp.eq.s32.totalorder %s21, 1
    %p107 = por %p105, %p106
    %p108 = scmp.ne.s32.totalorder %s99, %s100
    %p109 = scmp.eq.s32.totalorder %s21, 0
    %p110 = por %p108, %p109
    %p111 = scmp.ne.s32.totalorder %s99, %s100
    %p112 = scmp.eq.s32.totalorder %s22, 1
    %p113 = por %p111, %p112
    %p115 = scmp.ne.s32.totalorder %s100, %s114
    %p116 = scmp.eq.s32.totalorder %s22, 0
    %p117 = por %p115, %p116
    %s119 = sadd.s32 %s118, 1
    %p122 = scmp.eq.s32.totalorder %s16, 1
    %p123 = scmp.ne.s32.totalorder %s118, %s120
    %p124 = scmp.eq.s32.totalorder %s16, 0
    %p125 = por %p123, %p124
    %p126 = scmp.ne.s32.totalorder %s118, %s120
    %p127 = scmp.eq.s32.totalorder %s21, 1
    %p128 = por %p126, %p127
    %p129 = scmp.ne.s32.totalorder %s120, %s121
    %p130 = scmp.eq.s32.totalorder %s21, 0
    %p131 = por %p129, %p130
    %p132 = scmp.ne.s32.totalorder %s120, %s121
    %p133 = scmp.eq.s32.totalorder %s22, 1
    %p134 = por %p132, %p133
    %p136 = scmp.ne.s32.totalorder %s121, %s135
    %p137 = scmp.eq.s32.totalorder %s22, 0
    %p138 = por %p136, %p137
    %s140 = sadd.s32 %s139, 1
    %p143 = scmp.eq.s32.totalorder %s16, 1
    %p144 = scmp.ne.s32.totalorder %s139, %s141
    %p145 = scmp.eq.s32.totalorder %s16, 0
    %p146 = por %p144, %p145
    %p147 = scmp.ne.s32.totalorder %s139, %s141
    %p148 = scmp.eq.s32.totalorder %s21, 1
    %p149 = por %p147, %p148
    %p150 = scmp.ne.s32.totalorder %s141, %s142
    %p151 = scmp.eq.s32.totalorder %s21, 0
    %p152 = por %p150, %p151
    %p153 = scmp.ne.s32.totalorder %s141, %s142
    %p154 = scmp.eq.s32.totalorder %s22, 1
    %p155 = por %p153, %p154
    %p157 = scmp.ne.s32.totalorder %s142, %s156
    %p158 = scmp.eq.s32.totalorder %s22, 0
    %p159 = por %p157, %p158
    %s161 = sadd.s32 %s160, 1
    %p164 = scmp.eq.s32.totalorder %s16, 1
    %p165 = scmp.ne.s32.totalorder %s160, %s162
    %p166 = scmp.eq.s32.totalorder %s16, 0
    %p167 = por %p165, %p166
    %p168 = scmp.ne.s32.totalorder %s160, %s162
    %p169 = scmp.eq.s32.totalorder %s21, 1
    %p170 = por %p168, %p169
    %p171 = scmp.ne.s32.totalorder %s162, %s163
    %p172 = scmp.eq.s32.totalorder %s21, 0
    %p173 = por %p171, %p172
    %p174 = scmp.ne.s32.totalorder %s162, %s163
    %p175 = scmp.eq.s32.totalorder %s22, 1
    %p176 = por %p174, %p175
    %p178 = scmp.ne.s32.totalorder %s163, %s177
    %p179 = scmp.eq.s32.totalorder %s22, 0
    %p180 = por %p178, %p179
    %s182 = sadd.s32 %s181, 1
    %p185 = scmp.eq.s32.totalorder %s16, 1
    %p186 = scmp.ne.s32.totalorder %s181, %s183
    %p187 = scmp.eq.s32.totalorder %s16, 0
    %p188 = por %p186, %p187
    %p189 = scmp.ne.s32.totalorder %s181, %s183
    %p190 = scmp.eq.s32.totalorder %s21, 1
    %p191 = por %p189, %p190
    %p192 = scmp.ne.s32.totalorder %s183, %s184
    %p193 = scmp.eq.s32.totalorder %s21, 0
    %p194 = por %p192, %p193
    %p195 = scmp.ne.s32.totalorder %s183, %s184
    %p196 = scmp.eq.s32.totalorder %s22, 1
    %p197 = por %p195, %p196
    %p199 = scmp.ne.s32.totalorder %s184, %s198
    %p200 = scmp.eq.s32.totalorder %s22, 0
    %p201 = por %p199, %p200
    %s203 = sadd.s32 %s202, 1
    %p206 = scmp.eq.s32.totalorder %s16, 1
    %p207 = scmp.ne.s32.totalorder %s202, %s204
    %p208 = scmp.eq.s32.totalorder %s16, 0
    %p209 = por %p207, %p208
    %p210 = scmp.ne.s32.totalorder %s202, %s204
    %p211 = scmp.eq.s32.totalorder %s21, 1
    %p212 = por %p210, %p211
    %p213 = scmp.ne.s32.totalorder %s204, %s205
    %p214 = scmp.eq.s32.totalorder %s21, 0
    %p215 = por %p213, %p214
    %p216 = scmp.ne.s32.totalorder %s204, %s205
    %p217 = scmp.eq.s32.totalorder %s22, 1
    %p218 = por %p216, %p217
    %p220 = scmp.ne.s32.totalorder %s205, %s219
    %p221 = scmp.eq.s32.totalorder %s22, 0
    %p222 = por %p220, %p221
    %s223 = ssub.s32 %s16, %s23
    %p224 = scmp.eq.s32.totalorder %s223, 0
    %s226 = sadd.s32 %s225, 1
    %s227 = scalar_select %p224, %s225, %s226
    %p230 = pneg %p224
    %p231 = scmp.eq.s32.totalorder %s16, 1
    %p232 = por %p230, %p231
    %p233 = scmp.ne.s32.totalorder %s225, %s228
    %p234 = scmp.eq.s32.totalorder %s16, 0
    %p235 = por %p233, %p234
    %p236 = scmp.ne.s32.totalorder %s225, %s228
    %p237 = scmp.eq.s32.totalorder %s21, 1
    %p238 = por %p236, %p237
    %p239 = scmp.ne.s32.totalorder %s228, %s229
    %p240 = scmp.eq.s32.totalorder %s21, 0
    %p241 = por %p239, %p240
    %p242 = scmp.ne.s32.totalorder %s228, %s229
    %p243 = scmp.eq.s32.totalorder %s22, 1
    %p244 = por %p242, %p243
    %p246 = scmp.ne.s32.totalorder %s229, %s245
    %p247 = scmp.eq.s32.totalorder %s22, 0
    %p248 = por %p246, %p247
    %p249 = scmp.le.s32.totalorder 1, %s16
    %p250 = scmp.lt.s32.totalorder %s16, 3
    %p251 = pnand %p249, %p250
    %p252 = pneg %p251
    // Predicated region
    $region9: #{critic_forward.1} parent=5 // pred_check
      _
    $region10: #{critic_forward.1} parent=5 // pred_check_branch
      %254 = sbr.rel (%p251) target = $region12
    $region11: #{critic_forward.1} parent=5 // pred_region
      %s255 = ssub.s32 %s16, 1
      // Predicated region
      $region13: #{critic_forward.1} parent=11 // pred_check
        %p256 = pneg %p89
      $region14: #{critic_forward.1} parent=11 // pred_check_branch
        %258 = sbr.rel (%p256) target = $region16
      $region15: #{critic_forward.1} parent=11 // pred_region
        _
      $region16: #{critic_forward.1} parent=11 // pred_fallthru
        _
      // Predicated region
      $region17: #{critic_forward.1} parent=11 // pred_check
        %p259 = pneg %p110
      $region18: #{critic_forward.1} parent=11 // pred_check_branch
        %261 = sbr.rel (%p259) target = $region20
      $region19: #{critic_forward.1} parent=11 // pred_region
        _
      $region20: #{critic_forward.1} parent=11 // pred_fallthru
        _
      // Predicated region
      $region21: #{critic_forward.1} parent=11 // pred_check
        %p262 = pneg %p131
      $region22: #{critic_forward.1} parent=11 // pred_check_branch
        %264 = sbr.rel (%p262) target = $region24
      $region23: #{critic_forward.1} parent=11 // pred_region
        _
      $region24: #{critic_forward.1} parent=11 // pred_fallthru
        _
      // Predicated region
      $region25: #{critic_forward.1} parent=11 // pred_check
        %p265 = pneg %p152
      $region26: #{critic_forward.1} parent=11 // pred_check_branch
        %267 = sbr.rel (%p265) target = $region28
      $region27: #{critic_forward.1} parent=11 // pred_region
        _
      $region28: #{critic_forward.1} parent=11 // pred_fallthru
        _
      // Predicated region
      $region29: #{critic_forward.1} parent=11 // pred_check
        %p268 = pneg %p173
      $region30: #{critic_forward.1} parent=11 // pred_check_branch
        %270 = sbr.rel (%p268) target = $region32
      $region31: #{critic_forward.1} parent=11 // pred_region
        _
      $region32: #{critic_forward.1} parent=11 // pred_fallthru
        _
      // Predicated region
      $region33: #{critic_forward.1} parent=11 // pred_check
        %p271 = pneg %p194
      $region34: #{critic_forward.1} parent=11 // pred_check_branch
        %273 = sbr.rel (%p271) target = $region36
      $region35: #{critic_forward.1} parent=11 // pred_region
        _
      $region36: #{critic_forward.1} parent=11 // pred_fallthru
        _
      // Predicated region
      $region37: #{critic_forward.1} parent=11 // pred_check
        %p274 = pneg %p215
      $region38: #{critic_forward.1} parent=11 // pred_check_branch
        %276 = sbr.rel (%p274) target = $region40
      $region39: #{critic_forward.1} parent=11 // pred_region
        _
      $region40: #{critic_forward.1} parent=11 // pred_fallthru
        _
    $region12: #{critic_forward.1} parent=5 // pred_fallthru
      _
    %p277 = scmp.lt.s32.totalorder %s16, 2
    // Predicated region
    $region41: #{critic_forward.1} parent=5 // pred_check
      %p278 = pneg %p277
    $region42: #{critic_forward.1} parent=5 // pred_check_branch
      %280 = sbr.rel (%p278) target = $region44
    $region43: #{critic_forward.1} parent=5 // pred_region
      // Predicated region
      $region45: #{critic_forward.1} parent=43 // pred_check
        %p281 = pneg %p36
      $region46: #{critic_forward.1} parent=43 // pred_check_branch
        %283 = sbr.rel (%p281) target = $region48
      $region47: #{critic_forward.1} parent=43 // pred_region
        %s284 = smul.u32 16, %s16
        %p285 = scmp.lt.s32.totalorder %s284, 31
        %s286 = scalar_select %p285, %s284, 31
        %s287 = smul.addr %s286, 8
        %s288 = scalar_lea.vmem %s0, %s287
        %s289 = smul.u32 16, %s16
      $region48: #{critic_forward.1} parent=43 // pred_fallthru
        _
      // Predicated region
      $region49: #{critic_forward.1} parent=43 // pred_check
        %p290 = pneg %p62
      $region50: #{critic_forward.1} parent=43 // pred_check_branch
        %292 = sbr.rel (%p290) target = $region52
      $region51: #{critic_forward.1} parent=43 // pred_region
        %s293 = smul.u32 16, %s16
        %p294 = scmp.lt.s32.totalorder %s293, 31
        %s295 = scalar_select %p294, %s293, 31
        %s296 = smul.addr %s295, 8
        %s297 = scalar_lea.vmem %s1, %s296
        %s298 = smul.u32 16, %s16
      $region52: #{critic_forward.1} parent=43 // pred_fallthru
        _
    $region44: #{critic_forward.1} parent=5 // pred_fallthru
      _
    %p299 = scmp.le.s32.totalorder 1, %s16
    %p300 = scmp.lt.s32.totalorder %s16, 3
    %p301 = pnand %p299, %p300
    %p302 = pneg %p301
    // Predicated region
    $region53: #{critic_forward.1} parent=5 // pred_check
      _
    $region54: #{critic_forward.1} parent=5 // pred_check_branch
      %304 = sbr.rel (%p301) target = $region56
    $region55: #{critic_forward.1} parent=5 // pred_region
      %s305 = ssub.s32 %s16, 1
      %s306 = smul.u32 16, %s21
      %p307 = scmp.lt.s32.totalorder %s306, 31
      %s308 = scalar_select %p307, %s306, 31
      %s309 = smul.addr %s308, 8
      %s310 = scalar_lea.vmem %s0, %s309
      %p311 = pneg %p42
      %p312 = pneg %p39
      %s313 = smul.u32 16, %s21
      %p314 = scmp.lt.s32.totalorder %s313, 31
      %s315 = scalar_select %p314, %s313, 31
      %s316 = smul.addr %s315, 8
      %s317 = scalar_lea.vmem %s1, %s316
      %p318 = pneg %p68
      %p319 = pneg %p65
      %p320 = pneg %p89
      %p321 = pneg %p86
      %p322 = pneg %p110
      %p323 = pneg %p107
      %p324 = pneg %p131
      %p325 = pneg %p128
      %p326 = pneg %p152
      %p327 = pneg %p149
      %p328 = pneg %p173
      %p329 = pneg %p170
      %p330 = pneg %p194
      %p331 = pneg %p191
      %p332 = pneg %p215
      %p333 = pneg %p212
      %p334 = pneg %p241
      %p335 = pneg %p238
      %s336 = smul.u32 16, %s21
      %p337 = scmp.lt.s32.totalorder %s336, 31
      %s338 = scalar_select %p337, %s336, 31
      %s339 = smul.addr %s338, 8
      %s340 = scalar_lea.vmem %s9, %s339
      %s341 = smul.u32 16, %s21
      %p342 = scmp.lt.s32.totalorder %s341, 31
      %s343 = scalar_select %p342, %s341, 31
      %s344 = smul.addr %s343, 8
      %s345 = scalar_lea.vmem %s0, %s344
      %s346 = smul.u32 16, %s21
      %s347 = smul.u32 16, %s21
      %p348 = scmp.lt.s32.totalorder %s347, 31
      %s349 = scalar_select %p348, %s347, 31
      %s350 = smul.addr %s349, 8
      %s351 = scalar_lea.vmem %s1, %s350
      %s352 = smul.u32 16, %s21
      %s353 = smul.u32 16, %s21
      %p354 = scmp.lt.s32.totalorder %s353, 31
      %s355 = scalar_select %p354, %s353, 31
      %s356 = smul.addr %s355, 8
      %s357 = scalar_lea.vmem %s9, %s356
      %s358 = smul.u32 16, %s21
      %v359 = vld [vmem:[%s345] sm:$0xff]
      %v360 = vld [vmem:[%s345 + $0x8] sm:$0xff]
      %v361 = vld [vmem:[%s345 + $0x10] sm:$0xff]
      %v362 = vld [vmem:[%s345 + $0x18] sm:$0xff]
      %v363 = vld [vmem:[%s345 + $0x20] sm:$0xff]
      %v364 = vld [vmem:[%s345 + $0x28] sm:$0xff]
      %v365 = vld [vmem:[%s345 + $0x30] sm:$0xff]
      %v366 = vld [vmem:[%s345 + $0x38] sm:$0xff]
      %v367 = vld [vmem:[%s345 + $0x40] sm:$0xff]
      %v368 = vld [vmem:[%s345 + $0x48] sm:$0xff]
      %v369 = vld [vmem:[%s345 + $0x50] sm:$0xff]
      %v370 = vld [vmem:[%s345 + $0x58] sm:$0xff]
      %v371 = vld [vmem:[%s345 + $0x60] sm:$0xff]
      %v372 = vld [vmem:[%s345 + $0x68] sm:$0xff]
      %v373 = vld [vmem:[%s345 + $0x70] sm:$0xff]
      %v374 = vld [vmem:[%s345 + $0x78] sm:$0xff]
      %v375 = vld [vmem:[%s2] sm:$0xff]
      %v376 = vld [vmem:[%s2 + $0x8] sm:$0xff]
      %v377 = vld [vmem:[%s2 + $0x10] sm:$0xff]
      %v378 = vld [vmem:[%s2 + $0x18] sm:$0xff]
      %v379 = vld [vmem:[%s351] sm:$0xff]
      %v380 = vld [vmem:[%s351 + $0x8] sm:$0xff]
      %v381 = vld [vmem:[%s351 + $0x10] sm:$0xff]
      %v382 = vld [vmem:[%s351 + $0x18] sm:$0xff]
      %v383 = vld [vmem:[%s351 + $0x20] sm:$0xff]
      %v384 = vld [vmem:[%s351 + $0x28] sm:$0xff]
      %v385 = vld [vmem:[%s351 + $0x30] sm:$0xff]
      %v386 = vld [vmem:[%s351 + $0x38] sm:$0xff]
      %v387 = vld [vmem:[%s351 + $0x40] sm:$0xff]
      %v388 = vld [vmem:[%s351 + $0x48] sm:$0xff]
      %v389 = vld [vmem:[%s351 + $0x50] sm:$0xff]
      %v390 = vld [vmem:[%s351 + $0x58] sm:$0xff]
      %v391 = vld [vmem:[%s351 + $0x60] sm:$0xff]
      %v392 = vld [vmem:[%s351 + $0x68] sm:$0xff]
      %v393 = vld [vmem:[%s351 + $0x70] sm:$0xff]
      %v394 = vld [vmem:[%s351 + $0x78] sm:$0xff]
      %v395 = vld [vmem:[%s3] sm:$0xff]
      %v396 = vld [vmem:[%s3 + $0x8] sm:$0xff]
      %vm397 = vcmask 64512
      %v399 = vsel %vm397, %v379, 0
      %v402 = vsel %vm397, %v380, 0
      %v405 = vsel %vm397, %v381, 0
      %v408 = vsel %vm397, %v382, 0
      %v411 = vsel %vm397, %v383, 0
      %v414 = vsel %vm397, %v384, 0
      %v417 = vsel %vm397, %v385, 0
      %v420 = vsel %vm397, %v386, 0
      %v423 = vsel %vm397, %v387, 0
      %v426 = vsel %vm397, %v388, 0
      %v429 = vsel %vm397, %v389, 0
      %v432 = vsel %vm397, %v390, 0
      %v435 = vsel %vm397, %v391, 0
      %v438 = vsel %vm397, %v392, 0
      %v441 = vsel %vm397, %v393, 0
      %v444 = vsel %vm397, %v394, 0
      %446 = vmatprep.subr.mxu0 0.0
      %447 = vmatpush1.msra.mxu0 0.0
      %448 = vmatprep.subr.mxu0 0.0
      %449 = vmatpush1.msra.mxu0 0.0
      %450 = vmatprep.subr.mxu0 0.0
      %451 = vmatpush1.msra.mxu0 0.0
      %452 = vmatprep.subr.mxu0 0.0
      %453 = vmatpush1.msra.mxu0 0.0
      %454 = vmatprep.subr.mxu0 0.0
      %455 = vmatpush1.msra.mxu0 0.0
      %456 = vmatprep.subr.mxu0 0.0
      %457 = vmatpush1.msra.mxu0 0.0
      %458 = vmatprep.subr.mxu0 0.0
      %459 = vmatpush1.msra.mxu0 0.0
      %460 = vmatprep.subr.mxu0 0.0
      %461 = vmatpush1.msra.mxu0 0.0
      %462 = vmatprep.subr.mxu0 0.0
      %463 = vmatpush1.msra.mxu0 0.0
      %464 = vmatprep.subr.mxu0 0.0
      %465 = vmatpush1.msra.mxu0 0.0
      %466 = vmatprep.subr.mxu0 0.0
      %467 = vmatpush1.msra.mxu0 0.0
      %468 = vmatprep.subr.mxu0 0.0
      %469 = vmatpush1.msra.mxu0 0.0
      %470 = vmatprep.subr.mxu0 0.0
      %471 = vmatpush1.msra.mxu0 0.0
      %472 = vmatprep.subr.mxu0 0.0
      %473 = vmatpush1.msra.mxu0 0.0
      %474 = vmatprep.subr.mxu0 0.0
      %475 = vmatpush1.msra.mxu0 0.0
      %476 = vmatprep.subr.mxu0 %v396
      %477 = vmatpush1.msra.mxu0 %v395
      %478 = vmatprep.subr.mxu0 0.0
      %479 = vmatpush2.msra.mxu0 0.0
      %480 = vmatprep.subr.mxu0 0.0
      %481 = vmatpush2.msra.mxu0 0.0
      %482 = vmatprep.subr.mxu0 0.0
      %483 = vmatpush2.msra.mxu0 0.0
      %484 = vmatprep.subr.mxu0 0.0
      %485 = vmatpush2.msra.mxu0 0.0
      %486 = vmatprep.subr.mxu0 0.0
      %487 = vmatpush2.msra.mxu0 0.0
      %488 = vmatprep.subr.mxu0 0.0
      %489 = vmatpush2.msra.mxu0 0.0
      %490 = vmatprep.subr.mxu0 0.0
      %491 = vmatpush2.msra.mxu0 0.0
      %492 = vmatprep.subr.mxu0 0.0
      %493 = vmatpush2.msra.mxu0 0.0
      %494 = vmatprep.subr.mxu0 0.0
      %495 = vmatpush2.msra.mxu0 0.0
      %496 = vmatprep.subr.mxu0 0.0
      %497 = vmatpush2.msra.mxu0 0.0
      %498 = vmatprep.subr.mxu0 0.0
      %499 = vmatpush2.msra.mxu0 0.0
      %500 = vmatprep.subr.mxu0 0.0
      %501 = vmatpush2.msra.mxu0 0.0
      %502 = vmatprep.subr.mxu0 0.0
      %503 = vmatpush2.msra.mxu0 0.0
      %504 = vmatprep.subr.mxu0 0.0
      %505 = vmatpush2.msra.mxu0 0.0
      %506 = vmatprep.subr.mxu0 0.0
      %507 = vmatpush2.msra.mxu0 0.0
      %508 = vmatprep.subr.mxu0 0.0
      %509 = vmatpush2.msra.mxu0 0.0
      %510 = vmatprep.mubr.f32.mxu0 0.0
      %511 = vmatmul.mubr.f32.gmra.mxu0 %v399
      %v512 = vpop.f32.mrf.mxu0
      %v513 = vadd.f32 0.0, %v512
      %v514 = vpop.f32.mrf.mxu0
      %v515 = vadd.f32 0.0, %v514
      %516 = vmatprep.mubr.f32.mxu0 0.0
      %517 = vmatmul.mubr.f32.gmra.mxu0 %v402
      %v518 = vpop.f32.mrf.mxu0
      %v519 = vadd.f32 0.0, %v518
      %v520 = vpop.f32.mrf.mxu0
      %v521 = vadd.f32 0.0, %v520
      %522 = vmatprep.mubr.f32.mxu0 0.0
      %523 = vmatmul.mubr.f32.gmra.mxu0 %v405
      %v524 = vpop.f32.mrf.mxu0
      %v525 = vadd.f32 0.0, %v524
      %v526 = vpop.f32.mrf.mxu0
      %v527 = vadd.f32 0.0, %v526
      %528 = vmatprep.mubr.f32.mxu0 0.0
      %529 = vmatmul.mubr.f32.gmra.mxu0 %v408
      %v530 = vpop.f32.mrf.mxu0
      %v531 = vadd.f32 0.0, %v530
      %v532 = vpop.f32.mrf.mxu0
      %v533 = vadd.f32 0.0, %v532
      %534 = vmatprep.mubr.f32.mxu0 0.0
      %535 = vmatmul.mubr.f32.gmra.mxu0 %v411
      %v536 = vpop.f32.mrf.mxu0
      %v537 = vadd.f32 0.0, %v536
      %v538 = vpop.f32.mrf.mxu0
      %v539 = vadd.f32 0.0, %v538
      %540 = vmatprep.mubr.f32.mxu0 0.0
      %541 = vmatmul.mubr.f32.gmra.mxu0 %v414
      %v542 = vpop.f32.mrf.mxu0
      %v543 = vadd.f32 0.0, %v542
      %v544 = vpop.f32.mrf.mxu0
      %v545 = vadd.f32 0.0, %v544
      %546 = vmatprep.mubr.f32.mxu0 0.0
      %547 = vmatmul.mubr.f32.gmra.mxu0 %v417
      %v548 = vpop.f32.mrf.mxu0
      %v549 = vadd.f32 0.0, %v548
      %v550 = vpop.f32.mrf.mxu0
      %v551 = vadd.f32 0.0, %v550
      %552 = vmatprep.mubr.f32.mxu0 0.0
      %553 = vmatmul.mubr.f32.gmra.mxu0 %v420
      %v554 = vpop.f32.mrf.mxu0
      %v555 = vadd.f32 0.0, %v554
      %v556 = vpop.f32.mrf.mxu0
      %v557 = vadd.f32 0.0, %v556
      %558 = vmatprep.mubr.f32.mxu0 0.0
      %559 = vmatmul.mubr.f32.gmra.mxu0 %v423
      %v560 = vpop.f32.mrf.mxu0
      %v561 = vadd.f32 0.0, %v560
      %v562 = vpop.f32.mrf.mxu0
      %v563 = vadd.f32 0.0, %v562
      %564 = vmatprep.mubr.f32.mxu0 0.0
      %565 = vmatmul.mubr.f32.gmra.mxu0 %v426
      %v566 = vpop.f32.mrf.mxu0
      %v567 = vadd.f32 0.0, %v566
      %v568 = vpop.f32.mrf.mxu0
      %v569 = vadd.f32 0.0, %v568
      %570 = vmatprep.mubr.f32.mxu0 0.0
      %571 = vmatmul.mubr.f32.gmra.mxu0 %v429
      %v572 = vpop.f32.mrf.mxu0
      %v573 = vadd.f32 0.0, %v572
      %v574 = vpop.f32.mrf.mxu0
      %v575 = vadd.f32 0.0, %v574
      %576 = vmatprep.mubr.f32.mxu0 0.0
      %577 = vmatmul.mubr.f32.gmra.mxu0 %v432
      %v578 = vpop.f32.mrf.mxu0
      %v579 = vadd.f32 0.0, %v578
      %v580 = vpop.f32.mrf.mxu0
      %v581 = vadd.f32 0.0, %v580
      %582 = vmatprep.mubr.f32.mxu0 0.0
      %583 = vmatmul.mubr.f32.gmra.mxu0 %v435
      %v584 = vpop.f32.mrf.mxu0
      %v585 = vadd.f32 0.0, %v584
      %v586 = vpop.f32.mrf.mxu0
      %v587 = vadd.f32 0.0, %v586
      %588 = vmatprep.mubr.f32.mxu0 0.0
      %589 = vmatmul.mubr.f32.gmra.mxu0 %v438
      %v590 = vpop.f32.mrf.mxu0
      %v591 = vadd.f32 0.0, %v590
      %v592 = vpop.f32.mrf.mxu0
      %v593 = vadd.f32 0.0, %v592
      %594 = vmatprep.mubr.f32.mxu0 0.0
      %595 = vmatmul.mubr.f32.gmra.mxu0 %v441
      %v596 = vpop.f32.mrf.mxu0
      %v597 = vadd.f32 0.0, %v596
      %v598 = vpop.f32.mrf.mxu0
      %v599 = vadd.f32 0.0, %v598
      %600 = vmatprep.mubr.f32.mxu0 0.0
      %601 = vmatmul.mubr.f32.gmra.mxu0 %v444
      %v602 = vpop.f32.mrf.mxu0
      %v603 = vadd.f32 0.0, %v602
      %v604 = vpop.f32.mrf.mxu0
      %v605 = vadd.f32 0.0, %v604
      %606 = vdwg.mxu0
      %vm607 = vcmask 130048
      %v609 = vsel %vm607, %v359, 0
      %v612 = vsel %vm607, %v360, 0
      %v615 = vsel %vm607, %v361, 0
      %v618 = vsel %vm607, %v362, 0
      %v621 = vsel %vm607, %v363, 0
      %v624 = vsel %vm607, %v364, 0
      %v627 = vsel %vm607, %v365, 0
      %v630 = vsel %vm607, %v366, 0
      %v633 = vsel %vm607, %v367, 0
      %v636 = vsel %vm607, %v368, 0
      %v639 = vsel %vm607, %v369, 0
      %v642 = vsel %vm607, %v370, 0
      %v645 = vsel %vm607, %v371, 0
      %v648 = vsel %vm607, %v372, 0
      %v651 = vsel %vm607, %v373, 0
      %v654 = vsel %vm607, %v374, 0
      %656 = vmatprep.subr.mxu0 0.0
      %657 = vmatpush1.msra.mxu0 0.0
      %658 = vmatprep.subr.mxu0 0.0
      %659 = vmatpush1.msra.mxu0 0.0
      %660 = vmatprep.subr.mxu0 0.0
      %661 = vmatpush1.msra.mxu0 0.0
      %662 = vmatprep.subr.mxu0 0.0
      %663 = vmatpush1.msra.mxu0 0.0
      %664 = vmatprep.subr.mxu0 0.0
      %665 = vmatpush1.msra.mxu0 0.0
      %666 = vmatprep.subr.mxu0 0.0
      %667 = vmatpush1.msra.mxu0 0.0
      %668 = vmatprep.subr.mxu0 0.0
      %669 = vmatpush1.msra.mxu0 0.0
      %670 = vmatprep.subr.mxu0 0.0
      %671 = vmatpush1.msra.mxu0 0.0
      %672 = vmatprep.subr.mxu0 0.0
      %673 = vmatpush1.msra.mxu0 0.0
      %674 = vmatprep.subr.mxu0 0.0
      %675 = vmatpush1.msra.mxu0 0.0
      %676 = vmatprep.subr.mxu0 0.0
      %677 = vmatpush1.msra.mxu0 0.0
      %678 = vmatprep.subr.mxu0 0.0
      %679 = vmatpush1.msra.mxu0 0.0
      %680 = vmatprep.subr.mxu0 0.0
      %681 = vmatpush1.msra.mxu0 0.0
      %682 = vmatprep.subr.mxu0 0.0
      %683 = vmatpush1.msra.mxu0 0.0
      %684 = vmatprep.subr.mxu0 %v378
      %685 = vmatpush1.msra.mxu0 %v377
      %686 = vmatprep.subr.mxu0 %v376
      %687 = vmatpush1.msra.mxu0 %v375
      %688 = vmatprep.subr.mxu0 0.0
      %689 = vmatpush2.msra.mxu0 0.0
      %690 = vmatprep.subr.mxu0 0.0
      %691 = vmatpush2.msra.mxu0 0.0
      %692 = vmatprep.subr.mxu0 0.0
      %693 = vmatpush2.msra.mxu0 0.0
      %694 = vmatprep.subr.mxu0 0.0
      %695 = vmatpush2.msra.mxu0 0.0
      %696 = vmatprep.subr.mxu0 0.0
      %697 = vmatpush2.msra.mxu0 0.0
      %698 = vmatprep.subr.mxu0 0.0
      %699 = vmatpush2.msra.mxu0 0.0
      %700 = vmatprep.subr.mxu0 0.0
      %701 = vmatpush2.msra.mxu0 0.0
      %702 = vmatprep.subr.mxu0 0.0
      %703 = vmatpush2.msra.mxu0 0.0
      %704 = vmatprep.subr.mxu0 0.0
      %705 = vmatpush2.msra.mxu0 0.0
      %706 = vmatprep.subr.mxu0 0.0
      %707 = vmatpush2.msra.mxu0 0.0
      %708 = vmatprep.subr.mxu0 0.0
      %709 = vmatpush2.msra.mxu0 0.0
      %710 = vmatprep.subr.mxu0 0.0
      %711 = vmatpush2.msra.mxu0 0.0
      %712 = vmatprep.subr.mxu0 0.0
      %713 = vmatpush2.msra.mxu0 0.0
      %714 = vmatprep.subr.mxu0 0.0
      %715 = vmatpush2.msra.mxu0 0.0
      %716 = vmatprep.subr.mxu0 0.0
      %717 = vmatpush2.msra.mxu0 0.0
      %718 = vmatprep.subr.mxu0 0.0
      %719 = vmatpush2.msra.mxu0 0.0
      %720 = vmatprep.mubr.f32.mxu0 0.0
      %721 = vmatmul.mubr.f32.gmra.mxu0 %v609
      %v722 = vpop.f32.mrf.mxu0
      %v723 = vadd.f32 %v513, %v722
      %v724 = vpop.f32.mrf.mxu0
      %v725 = vadd.f32 %v515, %v724
      %726 = vmatprep.mubr.f32.mxu0 0.0
      %727 = vmatmul.mubr.f32.gmra.mxu0 %v612
      %v728 = vpop.f32.mrf.mxu0
      %v729 = vadd.f32 %v519, %v728
      %v730 = vpop.f32.mrf.mxu0
      %v731 = vadd.f32 %v521, %v730
      %732 = vmatprep.mubr.f32.mxu0 0.0
      %733 = vmatmul.mubr.f32.gmra.mxu0 %v615
      %v734 = vpop.f32.mrf.mxu0
      %v735 = vadd.f32 %v525, %v734
      %v736 = vpop.f32.mrf.mxu0
      %v737 = vadd.f32 %v527, %v736
      %738 = vmatprep.mubr.f32.mxu0 0.0
      %739 = vmatmul.mubr.f32.gmra.mxu0 %v618
      %v740 = vpop.f32.mrf.mxu0
      %v741 = vadd.f32 %v531, %v740
      %v742 = vpop.f32.mrf.mxu0
      %v743 = vadd.f32 %v533, %v742
      %744 = vmatprep.mubr.f32.mxu0 0.0
      %745 = vmatmul.mubr.f32.gmra.mxu0 %v621
      %v746 = vpop.f32.mrf.mxu0
      %v747 = vadd.f32 %v537, %v746
      %v748 = vpop.f32.mrf.mxu0
      %v749 = vadd.f32 %v539, %v748
      %750 = vmatprep.mubr.f32.mxu0 0.0
      %751 = vmatmul.mubr.f32.gmra.mxu0 %v624
      %v752 = vpop.f32.mrf.mxu0
      %v753 = vadd.f32 %v543, %v752
      %v754 = vpop.f32.mrf.mxu0
      %v755 = vadd.f32 %v545, %v754
      %756 = vmatprep.mubr.f32.mxu0 0.0
      %757 = vmatmul.mubr.f32.gmra.mxu0 %v627
      %v758 = vpop.f32.mrf.mxu0
      %v759 = vadd.f32 %v549, %v758
      %v760 = vpop.f32.mrf.mxu0
      %v761 = vadd.f32 %v551, %v760
      %762 = vmatprep.mubr.f32.mxu0 0.0
      %763 = vmatmul.mubr.f32.gmra.mxu0 %v630
      %v764 = vpop.f32.mrf.mxu0
      %v765 = vadd.f32 %v555, %v764
      %v766 = vpop.f32.mrf.mxu0
      %v767 = vadd.f32 %v557, %v766
      %768 = vmatprep.mubr.f32.mxu0 0.0
      %769 = vmatmul.mubr.f32.gmra.mxu0 %v633
      %v770 = vpop.f32.mrf.mxu0
      %v771 = vadd.f32 %v561, %v770
      %v772 = vpop.f32.mrf.mxu0
      %v773 = vadd.f32 %v563, %v772
      %774 = vmatprep.mubr.f32.mxu0 0.0
      %775 = vmatmul.mubr.f32.gmra.mxu0 %v636
      %v776 = vpop.f32.mrf.mxu0
      %v777 = vadd.f32 %v567, %v776
      %v778 = vpop.f32.mrf.mxu0
      %v779 = vadd.f32 %v569, %v778
      %780 = vmatprep.mubr.f32.mxu0 0.0
      %781 = vmatmul.mubr.f32.gmra.mxu0 %v639
      %v782 = vpop.f32.mrf.mxu0
      %v783 = vadd.f32 %v573, %v782
      %v784 = vpop.f32.mrf.mxu0
      %v785 = vadd.f32 %v575, %v784
      %786 = vmatprep.mubr.f32.mxu0 0.0
      %787 = vmatmul.mubr.f32.gmra.mxu0 %v642
      %v788 = vpop.f32.mrf.mxu0
      %v789 = vadd.f32 %v579, %v788
      %v790 = vpop.f32.mrf.mxu0
      %v791 = vadd.f32 %v581, %v790
      %792 = vmatprep.mubr.f32.mxu0 0.0
      %793 = vmatmul.mubr.f32.gmra.mxu0 %v645
      %v794 = vpop.f32.mrf.mxu0
      %v795 = vadd.f32 %v585, %v794
      %v796 = vpop.f32.mrf.mxu0
      %v797 = vadd.f32 %v587, %v796
      %798 = vmatprep.mubr.f32.mxu0 0.0
      %799 = vmatmul.mubr.f32.gmra.mxu0 %v648
      %v800 = vpop.f32.mrf.mxu0
      %v801 = vadd.f32 %v591, %v800
      %v802 = vpop.f32.mrf.mxu0
      %v803 = vadd.f32 %v593, %v802
      %804 = vmatprep.mubr.f32.mxu0 0.0
      %805 = vmatmul.mubr.f32.gmra.mxu0 %v651
      %v806 = vpop.f32.mrf.mxu0
      %v807 = vadd.f32 %v597, %v806
      %v808 = vpop.f32.mrf.mxu0
      %v809 = vadd.f32 %v599, %v808
      %810 = vmatprep.mubr.f32.mxu0 0.0
      %811 = vmatmul.mubr.f32.gmra.mxu0 %v654
      %v812 = vpop.f32.mrf.mxu0
      %v813 = vadd.f32 %v603, %v812
      %v814 = vpop.f32.mrf.mxu0
      %v815 = vadd.f32 %v605, %v814
      %816 = vdwg.mxu0
      %v817 = vld [vmem:[%s4] sm:$0x3]
      %v819 = vlaneseq
      %v820 = vshrl.u32 %v819, 7
      %v821 = vsub.s32 0, %v820
      %v822 = vrot.slane %v817, %v821
      %v823 = vlaneseq
      %v824 = vshrl.u32 %v823, 7
      %v825 = vsub.s32 1, %v824
      %v826 = vrot.slane %v817, %v825
      %v829 = vadd.f32 %v723, %v822
      %v830 = vadd.f32 %v725, %v826
      %v831 = vadd.f32 %v729, %v822
      %v832 = vadd.f32 %v731, %v826
      %v833 = vadd.f32 %v735, %v822
      %v834 = vadd.f32 %v737, %v826
      %v835 = vadd.f32 %v741, %v822
      %v836 = vadd.f32 %v743, %v826
      %v837 = vadd.f32 %v747, %v822
      %v838 = vadd.f32 %v749, %v826
      %v839 = vadd.f32 %v753, %v822
      %v840 = vadd.f32 %v755, %v826
      %v841 = vadd.f32 %v759, %v822
      %v842 = vadd.f32 %v761, %v826
      %v843 = vadd.f32 %v765, %v822
      %v844 = vadd.f32 %v767, %v826
      %v845 = vadd.f32 %v771, %v822
      %v846 = vadd.f32 %v773, %v826
      %v847 = vadd.f32 %v777, %v822
      %v848 = vadd.f32 %v779, %v826
      %v849 = vadd.f32 %v783, %v822
      %v850 = vadd.f32 %v785, %v826
      %v851 = vadd.f32 %v789, %v822
      %v852 = vadd.f32 %v791, %v826
      %v853 = vadd.f32 %v795, %v822
      %v854 = vadd.f32 %v797, %v826
      %v855 = vadd.f32 %v801, %v822
      %v856 = vadd.f32 %v803, %v826
      %v857 = vadd.f32 %v807, %v822
      %v858 = vadd.f32 %v809, %v826
      %v859 = vadd.f32 %v813, %v822
      %v860 = vadd.f32 %v815, %v826
      %v861 = vmax.f32 %v829, 0.0
      %v862 = vmax.f32 %v830, 0.0
      %v863 = vmax.f32 %v831, 0.0
      %v864 = vmax.f32 %v832, 0.0
      %v865 = vmax.f32 %v833, 0.0
      %v866 = vmax.f32 %v834, 0.0
      %v867 = vmax.f32 %v835, 0.0
      %v868 = vmax.f32 %v836, 0.0
      %v869 = vmax.f32 %v837, 0.0
      %v870 = vmax.f32 %v838, 0.0
      %v871 = vmax.f32 %v839, 0.0
      %v872 = vmax.f32 %v840, 0.0
      %v873 = vmax.f32 %v841, 0.0
      %v874 = vmax.f32 %v842, 0.0
      %v875 = vmax.f32 %v843, 0.0
      %v876 = vmax.f32 %v844, 0.0
      %v877 = vmax.f32 %v845, 0.0
      %v878 = vmax.f32 %v846, 0.0
      %v879 = vmax.f32 %v847, 0.0
      %v880 = vmax.f32 %v848, 0.0
      %v881 = vmax.f32 %v849, 0.0
      %v882 = vmax.f32 %v850, 0.0
      %v883 = vmax.f32 %v851, 0.0
      %v884 = vmax.f32 %v852, 0.0
      %v885 = vmax.f32 %v853, 0.0
      %v886 = vmax.f32 %v854, 0.0
      %v887 = vmax.f32 %v855, 0.0
      %v888 = vmax.f32 %v856, 0.0
      %v889 = vmax.f32 %v857, 0.0
      %v890 = vmax.f32 %v858, 0.0
      %v891 = vmax.f32 %v859, 0.0
      %v892 = vmax.f32 %v860, 0.0
      %v893 = vld [vmem:[%s5] sm:$0xff]
      %v894 = vld [vmem:[%s5 + $0x8] sm:$0xff]
      %v895 = vld [vmem:[%s5 + $0x10] sm:$0xff]
      %v896 = vld [vmem:[%s5 + $0x18] sm:$0xff]
      %v897 = vld [vmem:[%s5 + $0x20] sm:$0xff]
      %v898 = vld [vmem:[%s5 + $0x28] sm:$0xff]
      %v899 = vld [vmem:[%s5 + $0x30] sm:$0xff]
      %v900 = vld [vmem:[%s5 + $0x38] sm:$0xff]
      %v901 = vld [vmem:[%s5 + $0x40] sm:$0xff]
      %v902 = vld [vmem:[%s5 + $0x48] sm:$0xff]
      %v903 = vld [vmem:[%s5 + $0x50] sm:$0xff]
      %v904 = vld [vmem:[%s5 + $0x58] sm:$0xff]
      %v905 = vld [vmem:[%s5 + $0x60] sm:$0xff]
      %v906 = vld [vmem:[%s5 + $0x68] sm:$0xff]
      %v907 = vld [vmem:[%s5 + $0x70] sm:$0xff]
      %v908 = vld [vmem:[%s5 + $0x78] sm:$0xff]
      %v909 = vld [vmem:[%s5 + $0x80] sm:$0xff]
      %v910 = vld [vmem:[%s5 + $0x88] sm:$0xff]
      %v911 = vld [vmem:[%s5 + $0x90] sm:$0xff]
      %v912 = vld [vmem:[%s5 + $0x98] sm:$0xff]
      %v913 = vld [vmem:[%s5 + $0xa0] sm:$0xff]
      %v914 = vld [vmem:[%s5 + $0xa8] sm:$0xff]
      %v915 = vld [vmem:[%s5 + $0xb0] sm:$0xff]
      %v916 = vld [vmem:[%s5 + $0xb8] sm:$0xff]
      %v917 = vld [vmem:[%s5 + $0xc0] sm:$0xff]
      %v918 = vld [vmem:[%s5 + $0xc8] sm:$0xff]
      %v919 = vld [vmem:[%s5 + $0xd0] sm:$0xff]
      %v920 = vld [vmem:[%s5 + $0xd8] sm:$0xff]
      %v921 = vld [vmem:[%s5 + $0xe0] sm:$0xff]
      %v922 = vld [vmem:[%s5 + $0xe8] sm:$0xff]
      %v923 = vld [vmem:[%s5 + $0xf0] sm:$0xff]
      %v924 = vld [vmem:[%s5 + $0xf8] sm:$0xff]
      %v925 = vld [vmem:[%s5 + $0x100] sm:$0xff]
      %v926 = vld [vmem:[%s5 + $0x108] sm:$0xff]
      %v927 = vld [vmem:[%s5 + $0x110] sm:$0xff]
      %v928 = vld [vmem:[%s5 + $0x118] sm:$0xff]
      %v929 = vld [vmem:[%s5 + $0x120] sm:$0xff]
      %v930 = vld [vmem:[%s5 + $0x128] sm:$0xff]
      %v931 = vld [vmem:[%s5 + $0x130] sm:$0xff]
      %v932 = vld [vmem:[%s5 + $0x138] sm:$0xff]
      %v933 = vld [vmem:[%s5 + $0x140] sm:$0xff]
      %v934 = vld [vmem:[%s5 + $0x148] sm:$0xff]
      %v935 = vld [vmem:[%s5 + $0x150] sm:$0xff]
      %v936 = vld [vmem:[%s5 + $0x158] sm:$0xff]
      %v937 = vld [vmem:[%s5 + $0x160] sm:$0xff]
      %v938 = vld [vmem:[%s5 + $0x168] sm:$0xff]
      %v939 = vld [vmem:[%s5 + $0x170] sm:$0xff]
      %v940 = vld [vmem:[%s5 + $0x178] sm:$0xff]
      %v941 = vld [vmem:[%s5 + $0x180] sm:$0xff]
      %v942 = vld [vmem:[%s5 + $0x188] sm:$0xff]
      %v943 = vld [vmem:[%s5 + $0x190] sm:$0xff]
      %v944 = vld [vmem:[%s5 + $0x198] sm:$0xff]
      %v945 = vld [vmem:[%s5 + $0x1a0] sm:$0xff]
      %v946 = vld [vmem:[%s5 + $0x1a8] sm:$0xff]
      %v947 = vld [vmem:[%s5 + $0x1b0] sm:$0xff]
      %v948 = vld [vmem:[%s5 + $0x1b8] sm:$0xff]
      %v949 = vld [vmem:[%s5 + $0x1c0] sm:$0xff]
      %v950 = vld [vmem:[%s5 + $0x1c8] sm:$0xff]
      %v951 = vld [vmem:[%s5 + $0x1d0] sm:$0xff]
      %v952 = vld [vmem:[%s5 + $0x1d8] sm:$0xff]
      %v953 = vld [vmem:[%s5 + $0x1e0] sm:$0xff]
      %v954 = vld [vmem:[%s5 + $0x1e8] sm:$0xff]
      %v955 = vld [vmem:[%s5 + $0x1f0] sm:$0xff]
      %v956 = vld [vmem:[%s5 + $0x1f8] sm:$0xff]
      %v957 = vld [vmem:[%s6] sm:$0x3]
      %v959 = vlaneseq
      %v960 = vshrl.u32 %v959, 7
      %v961 = vsub.s32 0, %v960
      %v962 = vrot.slane %v957, %v961
      %v963 = vlaneseq
      %v964 = vshrl.u32 %v963, 7
      %v965 = vsub.s32 1, %v964
      %v966 = vrot.slane %v957, %v965
      %969 = vmatprep.subr.mxu0 %v924
      %970 = vmatpush1.msra.mxu0 %v923
      %971 = vmatprep.subr.mxu0 %v922
      %972 = vmatpush1.msra.mxu0 %v921
      %973 = vmatprep.subr.mxu0 %v920
      %974 = vmatpush1.msra.mxu0 %v919
      %975 = vmatprep.subr.mxu0 %v918
      %976 = vmatpush1.msra.mxu0 %v917
      %977 = vmatprep.subr.mxu0 %v916
      %978 = vmatpush1.msra.mxu0 %v915
      %979 = vmatprep.subr.mxu0 %v914
      %980 = vmatpush1.msra.mxu0 %v913
      %981 = vmatprep.subr.mxu0 %v912
      %982 = vmatpush1.msra.mxu0 %v911
      %983 = vmatprep.subr.mxu0 %v910
      %984 = vmatpush1.msra.mxu0 %v909
      %985 = vmatprep.subr.mxu0 %v908
      %986 = vmatpush1.msra.mxu0 %v907
      %987 = vmatprep.subr.mxu0 %v906
      %988 = vmatpush1.msra.mxu0 %v905
      %989 = vmatprep.subr.mxu0 %v904
      %990 = vmatpush1.msra.mxu0 %v903
      %991 = vmatprep.subr.mxu0 %v902
      %992 = vmatpush1.msra.mxu0 %v901
      %993 = vmatprep.subr.mxu0 %v900
      %994 = vmatpush1.msra.mxu0 %v899
      %995 = vmatprep.subr.mxu0 %v898
      %996 = vmatpush1.msra.mxu0 %v897
      %997 = vmatprep.subr.mxu0 %v896
      %998 = vmatpush1.msra.mxu0 %v895
      %999 = vmatprep.subr.mxu0 %v894
      %1000 = vmatpush1.msra.mxu0 %v893
      %1001 = vmatprep.subr.mxu0 %v956
      %1002 = vmatpush2.msra.mxu0 %v955
      %1003 = vmatprep.subr.mxu0 %v954
      %1004 = vmatpush2.msra.mxu0 %v953
      %1005 = vmatprep.subr.mxu0 %v952
      %1006 = vmatpush2.msra.mxu0 %v951
      %1007 = vmatprep.subr.mxu0 %v950
      %1008 = vmatpush2.msra.mxu0 %v949
      %1009 = vmatprep.subr.mxu0 %v948
      %1010 = vmatpush2.msra.mxu0 %v947
      %1011 = vmatprep.subr.mxu0 %v946
      %1012 = vmatpush2.msra.mxu0 %v945
      %1013 = vmatprep.subr.mxu0 %v944
      %1014 = vmatpush2.msra.mxu0 %v943
      %1015 = vmatprep.subr.mxu0 %v942
      %1016 = vmatpush2.msra.mxu0 %v941
      %1017 = vmatprep.subr.mxu0 %v940
      %1018 = vmatpush2.msra.mxu0 %v939
      %1019 = vmatprep.subr.mxu0 %v938
      %1020 = vmatpush2.msra.mxu0 %v937
      %1021 = vmatprep.subr.mxu0 %v936
      %1022 = vmatpush2.msra.mxu0 %v935
      %1023 = vmatprep.subr.mxu0 %v934
      %1024 = vmatpush2.msra.mxu0 %v933
      %1025 = vmatprep.subr.mxu0 %v932
      %1026 = vmatpush2.msra.mxu0 %v931
      %1027 = vmatprep.subr.mxu0 %v930
      %1028 = vmatpush2.msra.mxu0 %v929
      %1029 = vmatprep.subr.mxu0 %v928
      %1030 = vmatpush2.msra.mxu0 %v927
      %1031 = vmatprep.subr.mxu0 %v926
      %1032 = vmatpush2.msra.mxu0 %v925
      %1033 = vmatprep.mubr.f32.mxu0 %v862
      %1034 = vmatmul.mubr.f32.gmra.mxu0 %v861
      %v1035 = vpop.f32.mrf.mxu0
      %v1036 = vadd.f32 %v962, %v1035
      %v1037 = vpop.f32.mrf.mxu0
      %v1038 = vadd.f32 %v966, %v1037
      %1039 = vmatprep.mubr.f32.mxu0 %v864
      %1040 = vmatmul.mubr.f32.gmra.mxu0 %v863
      %v1041 = vpop.f32.mrf.mxu0
      %v1042 = vadd.f32 %v962, %v1041
      %v1043 = vpop.f32.mrf.mxu0
      %v1044 = vadd.f32 %v966, %v1043
      %1045 = vmatprep.mubr.f32.mxu0 %v866
      %1046 = vmatmul.mubr.f32.gmra.mxu0 %v865
      %v1047 = vpop.f32.mrf.mxu0
      %v1048 = vadd.f32 %v962, %v1047
      %v1049 = vpop.f32.mrf.mxu0
      %v1050 = vadd.f32 %v966, %v1049
      %1051 = vmatprep.mubr.f32.mxu0 %v868
      %1052 = vmatmul.mubr.f32.gmra.mxu0 %v867
      %v1053 = vpop.f32.mrf.mxu0
      %v1054 = vadd.f32 %v962, %v1053
      %v1055 = vpop.f32.mrf.mxu0
      %v1056 = vadd.f32 %v966, %v1055
      %1057 = vmatprep.mubr.f32.mxu0 %v870
      %1058 = vmatmul.mubr.f32.gmra.mxu0 %v869
      %v1059 = vpop.f32.mrf.mxu0
      %v1060 = vadd.f32 %v962, %v1059
      %v1061 = vpop.f32.mrf.mxu0
      %v1062 = vadd.f32 %v966, %v1061
      %1063 = vmatprep.mubr.f32.mxu0 %v872
      %1064 = vmatmul.mubr.f32.gmra.mxu0 %v871
      %v1065 = vpop.f32.mrf.mxu0
      %v1066 = vadd.f32 %v962, %v1065
      %v1067 = vpop.f32.mrf.mxu0
      %v1068 = vadd.f32 %v966, %v1067
      %1069 = vmatprep.mubr.f32.mxu0 %v874
      %1070 = vmatmul.mubr.f32.gmra.mxu0 %v873
      %v1071 = vpop.f32.mrf.mxu0
      %v1072 = vadd.f32 %v962, %v1071
      %v1073 = vpop.f32.mrf.mxu0
      %v1074 = vadd.f32 %v966, %v1073
      %1075 = vmatprep.mubr.f32.mxu0 %v876
      %1076 = vmatmul.mubr.f32.gmra.mxu0 %v875
      %v1077 = vpop.f32.mrf.mxu0
      %v1078 = vadd.f32 %v962, %v1077
      %v1079 = vpop.f32.mrf.mxu0
      %v1080 = vadd.f32 %v966, %v1079
      %1081 = vmatprep.mubr.f32.mxu0 %v878
      %1082 = vmatmul.mubr.f32.gmra.mxu0 %v877
      %v1083 = vpop.f32.mrf.mxu0
      %v1084 = vadd.f32 %v962, %v1083
      %v1085 = vpop.f32.mrf.mxu0
      %v1086 = vadd.f32 %v966, %v1085
      %1087 = vmatprep.mubr.f32.mxu0 %v880
      %1088 = vmatmul.mubr.f32.gmra.mxu0 %v879
      %v1089 = vpop.f32.mrf.mxu0
      %v1090 = vadd.f32 %v962, %v1089
      %v1091 = vpop.f32.mrf.mxu0
      %v1092 = vadd.f32 %v966, %v1091
      %1093 = vmatprep.mubr.f32.mxu0 %v882
      %1094 = vmatmul.mubr.f32.gmra.mxu0 %v881
      %v1095 = vpop.f32.mrf.mxu0
      %v1096 = vadd.f32 %v962, %v1095
      %v1097 = vpop.f32.mrf.mxu0
      %v1098 = vadd.f32 %v966, %v1097
      %1099 = vmatprep.mubr.f32.mxu0 %v884
      %1100 = vmatmul.mubr.f32.gmra.mxu0 %v883
      %v1101 = vpop.f32.mrf.mxu0
      %v1102 = vadd.f32 %v962, %v1101
      %v1103 = vpop.f32.mrf.mxu0
      %v1104 = vadd.f32 %v966, %v1103
      %1105 = vmatprep.mubr.f32.mxu0 %v886
      %1106 = vmatmul.mubr.f32.gmra.mxu0 %v885
      %v1107 = vpop.f32.mrf.mxu0
      %v1108 = vadd.f32 %v962, %v1107
      %v1109 = vpop.f32.mrf.mxu0
      %v1110 = vadd.f32 %v966, %v1109
      %1111 = vmatprep.mubr.f32.mxu0 %v888
      %1112 = vmatmul.mubr.f32.gmra.mxu0 %v887
      %v1113 = vpop.f32.mrf.mxu0
      %v1114 = vadd.f32 %v962, %v1113
      %v1115 = vpop.f32.mrf.mxu0
      %v1116 = vadd.f32 %v966, %v1115
      %1117 = vmatprep.mubr.f32.mxu0 %v890
      %1118 = vmatmul.mubr.f32.gmra.mxu0 %v889
      %v1119 = vpop.f32.mrf.mxu0
      %v1120 = vadd.f32 %v962, %v1119
      %v1121 = vpop.f32.mrf.mxu0
      %v1122 = vadd.f32 %v966, %v1121
      %1123 = vmatprep.mubr.f32.mxu0 %v892
      %1124 = vmatmul.mubr.f32.gmra.mxu0 %v891
      %v1125 = vpop.f32.mrf.mxu0
      %v1126 = vadd.f32 %v962, %v1125
      %v1127 = vpop.f32.mrf.mxu0
      %v1128 = vadd.f32 %v966, %v1127
      %1129 = vdwg.mxu0
      %v1130 = vmax.f32 %v1036, 0.0
      %v1131 = vmax.f32 %v1038, 0.0
      %v1132 = vmax.f32 %v1042, 0.0
      %v1133 = vmax.f32 %v1044, 0.0
      %v1134 = vmax.f32 %v1048, 0.0
      %v1135 = vmax.f32 %v1050, 0.0
      %v1136 = vmax.f32 %v1054, 0.0
      %v1137 = vmax.f32 %v1056, 0.0
      %v1138 = vmax.f32 %v1060, 0.0
      %v1139 = vmax.f32 %v1062, 0.0
      %v1140 = vmax.f32 %v1066, 0.0
      %v1141 = vmax.f32 %v1068, 0.0
      %v1142 = vmax.f32 %v1072, 0.0
      %v1143 = vmax.f32 %v1074, 0.0
      %v1144 = vmax.f32 %v1078, 0.0
      %v1145 = vmax.f32 %v1080, 0.0
      %v1146 = vmax.f32 %v1084, 0.0
      %v1147 = vmax.f32 %v1086, 0.0
      %v1148 = vmax.f32 %v1090, 0.0
      %v1149 = vmax.f32 %v1092, 0.0
      %v1150 = vmax.f32 %v1096, 0.0
      %v1151 = vmax.f32 %v1098, 0.0
      %v1152 = vmax.f32 %v1102, 0.0
      %v1153 = vmax.f32 %v1104, 0.0
      %v1154 = vmax.f32 %v1108, 0.0
      %v1155 = vmax.f32 %v1110, 0.0
      %v1156 = vmax.f32 %v1114, 0.0
      %v1157 = vmax.f32 %v1116, 0.0
      %v1158 = vmax.f32 %v1120, 0.0
      %v1159 = vmax.f32 %v1122, 0.0
      %v1160 = vmax.f32 %v1126, 0.0
      %v1161 = vmax.f32 %v1128, 0.0
      %v1162 = vld [vmem:[%s7] sm:$0x3]
      %v1164 = vlaneseq
      %v1165 = vshrl.u32 %v1164, 7
      %v1166 = vsub.s32 0, %v1165
      %v1167 = vrot.slane %v1162, %v1166
      %v1168 = vlaneseq
      %v1169 = vshrl.u32 %v1168, 7
      %v1170 = vsub.s32 1, %v1169
      %v1171 = vrot.slane %v1162, %v1170
      %v1174 = vmul.f32 %v1130, %v1167
      %v1175 = vmul.f32 %v1131, %v1171
      %v1176 = vmul.f32 %v1132, %v1167
      %v1177 = vmul.f32 %v1133, %v1171
      %v1178 = vmul.f32 %v1134, %v1167
      %v1179 = vmul.f32 %v1135, %v1171
      %v1180 = vmul.f32 %v1136, %v1167
      %v1181 = vmul.f32 %v1137, %v1171
      %v1182 = vmul.f32 %v1138, %v1167
      %v1183 = vmul.f32 %v1139, %v1171
      %v1184 = vmul.f32 %v1140, %v1167
      %v1185 = vmul.f32 %v1141, %v1171
      %v1186 = vmul.f32 %v1142, %v1167
      %v1187 = vmul.f32 %v1143, %v1171
      %v1188 = vmul.f32 %v1144, %v1167
      %v1189 = vmul.f32 %v1145, %v1171
      %v1190 = vmul.f32 %v1146, %v1167
      %v1191 = vmul.f32 %v1147, %v1171
      %v1192 = vmul.f32 %v1148, %v1167
      %v1193 = vmul.f32 %v1149, %v1171
      %v1194 = vmul.f32 %v1150, %v1167
      %v1195 = vmul.f32 %v1151, %v1171
      %v1196 = vmul.f32 %v1152, %v1167
      %v1197 = vmul.f32 %v1153, %v1171
      %v1198 = vmul.f32 %v1154, %v1167
      %v1199 = vmul.f32 %v1155, %v1171
      %v1200 = vmul.f32 %v1156, %v1167
      %v1201 = vmul.f32 %v1157, %v1171
      %v1202 = vmul.f32 %v1158, %v1167
      %v1203 = vmul.f32 %v1159, %v1171
      %v1204 = vmul.f32 %v1160, %v1167
      %v1205 = vmul.f32 %v1161, %v1171
      %v1206 = vadd.f32 %v1174, %v1175
      %1207 = vadd.xlane.f32.xlu0 %v1206
      %v1208 = vpop.xlane.xlu0 %1207
      %v1209 = vadd.f32 %v1176, %v1177
      %1210 = vadd.xlane.f32.xlu0 %v1209
      %v1211 = vpop.xlane.xlu0 %1210
      %v1212 = vadd.f32 %v1178, %v1179
      %1213 = vadd.xlane.f32.xlu0 %v1212
      %v1214 = vpop.xlane.xlu0 %1213
      %v1215 = vadd.f32 %v1180, %v1181
      %1216 = vadd.xlane.f32.xlu0 %v1215
      %v1217 = vpop.xlane.xlu0 %1216
      %v1218 = vadd.f32 %v1182, %v1183
      %1219 = vadd.xlane.f32.xlu0 %v1218
      %v1220 = vpop.xlane.xlu0 %1219
      %v1221 = vadd.f32 %v1184, %v1185
      %1222 = vadd.xlane.f32.xlu0 %v1221
      %v1223 = vpop.xlane.xlu0 %1222
      %v1224 = vadd.f32 %v1186, %v1187
      %1225 = vadd.xlane.f32.xlu0 %v1224
      %v1226 = vpop.xlane.xlu0 %1225
      %v1227 = vadd.f32 %v1188, %v1189
      %1228 = vadd.xlane.f32.xlu0 %v1227
      %v1229 = vpop.xlane.xlu0 %1228
      %v1230 = vadd.f32 %v1190, %v1191
      %1231 = vadd.xlane.f32.xlu0 %v1230
      %v1232 = vpop.xlane.xlu0 %1231
      %v1233 = vadd.f32 %v1192, %v1193
      %1234 = vadd.xlane.f32.xlu0 %v1233
      %v1235 = vpop.xlane.xlu0 %1234
      %v1236 = vadd.f32 %v1194, %v1195
      %1237 = vadd.xlane.f32.xlu0 %v1236
      %v1238 = vpop.xlane.xlu0 %1237
      %v1239 = vadd.f32 %v1196, %v1197
      %1240 = vadd.xlane.f32.xlu0 %v1239
      %v1241 = vpop.xlane.xlu0 %1240
      %v1242 = vadd.f32 %v1198, %v1199
      %1243 = vadd.xlane.f32.xlu0 %v1242
      %v1244 = vpop.xlane.xlu0 %1243
      %v1245 = vadd.f32 %v1200, %v1201
      %1246 = vadd.xlane.f32.xlu0 %v1245
      %v1247 = vpop.xlane.xlu0 %1246
      %v1248 = vadd.f32 %v1202, %v1203
      %1249 = vadd.xlane.f32.xlu0 %v1248
      %v1250 = vpop.xlane.xlu0 %1249
      %v1251 = vadd.f32 %v1204, %v1205
      %1252 = vadd.xlane.f32.xlu0 %v1251
      %v1253 = vpop.xlane.xlu0 %1252
      %s1254 = sld [smem:[#allocation2]]
      %v1255 = vstv %s1254
      %v1256 = vadd.f32 %v1208, %v1255
      %v1257 = vadd.f32 %v1211, %v1255
      %v1258 = vadd.f32 %v1214, %v1255
      %v1259 = vadd.f32 %v1217, %v1255
      %v1260 = vadd.f32 %v1220, %v1255
      %v1261 = vadd.f32 %v1223, %v1255
      %v1262 = vadd.f32 %v1226, %v1255
      %v1263 = vadd.f32 %v1229, %v1255
      %v1264 = vadd.f32 %v1232, %v1255
      %v1265 = vadd.f32 %v1235, %v1255
      %v1266 = vadd.f32 %v1238, %v1255
      %v1267 = vadd.f32 %v1241, %v1255
      %v1268 = vadd.f32 %v1244, %v1255
      %v1269 = vadd.f32 %v1247, %v1255
      %v1270 = vadd.f32 %v1250, %v1255
      %v1271 = vadd.f32 %v1253, %v1255
      %vm1272 = vcmask 7168
      %1273 = vst.msk [vmem:[%s357] sm:$0xff] %vm1272, %v1256
      %1274 = vst.msk [vmem:[%s357 + $0x8] sm:$0xff] %vm1272, %v1257
      %1275 = vst.msk [vmem:[%s357 + $0x10] sm:$0xff] %vm1272, %v1258
      %1276 = vst.msk [vmem:[%s357 + $0x18] sm:$0xff] %vm1272, %v1259
      %1277 = vst.msk [vmem:[%s357 + $0x20] sm:$0xff] %vm1272, %v1260
      %1278 = vst.msk [vmem:[%s357 + $0x28] sm:$0xff] %vm1272, %v1261
      %1279 = vst.msk [vmem:[%s357 + $0x30] sm:$0xff] %vm1272, %v1262
      %1280 = vst.msk [vmem:[%s357 + $0x38] sm:$0xff] %vm1272, %v1263
      %1281 = vst.msk [vmem:[%s357 + $0x40] sm:$0xff] %vm1272, %v1264
      %1282 = vst.msk [vmem:[%s357 + $0x48] sm:$0xff] %vm1272, %v1265
      %1283 = vst.msk [vmem:[%s357 + $0x50] sm:$0xff] %vm1272, %v1266
      %1284 = vst.msk [vmem:[%s357 + $0x58] sm:$0xff] %vm1272, %v1267
      %1285 = vst.msk [vmem:[%s357 + $0x60] sm:$0xff] %vm1272, %v1268
      %1286 = vst.msk [vmem:[%s357 + $0x68] sm:$0xff] %vm1272, %v1269
      %1287 = vst.msk [vmem:[%s357 + $0x70] sm:$0xff] %vm1272, %v1270
      %1288 = vst.msk [vmem:[%s357 + $0x78] sm:$0xff] %vm1272, %v1271
      %s1289 = smul.u32 16, %s21
      %p1290 = scmp.lt.s32.totalorder %s1289, 31
      %s1291 = scalar_select %p1290, %s1289, 31
      %s1292 = smul.addr %s1291, 8
      %s1293 = scalar_lea.vmem %s9, %s1292
      // Predicated region
      $region57: #{critic_forward.1} parent=55 // pred_check
        %p1294 = pneg %p238
      $region58: #{critic_forward.1} parent=55 // pred_check_branch
        %1296 = sbr.rel (%p1294) target = $region60
      $region59: #{critic_forward.1} parent=55 // pred_region
        %s1297 = smul.u32 16, %s21
      $region60: #{critic_forward.1} parent=55 // pred_fallthru
        _
    $region56: #{critic_forward.1} parent=5 // pred_fallthru
      _
    %p1298 = scmp.le.s32.totalorder 2, %s16
    // Predicated region
    $region61: #{critic_forward.1} parent=5 // pred_check
      %p1299 = pneg %p1298
    $region62: #{critic_forward.1} parent=5 // pred_check_branch
      %1301 = sbr.rel (%p1299) target = $region64
    $region63: #{critic_forward.1} parent=5 // pred_region
      %s1302 = ssub.s32 %s16, 2
      // Predicated region
      $region65: #{critic_forward.1} parent=63 // pred_check
        %p1303 = pneg %p244
      $region66: #{critic_forward.1} parent=63 // pred_check_branch
        %1305 = sbr.rel (%p1303) target = $region68
      $region67: #{critic_forward.1} parent=63 // pred_region
        %s1306 = smul.u32 16, %s22
        %p1307 = scmp.lt.s32.totalorder %s1306, 31
        %s1308 = scalar_select %p1307, %s1306, 31
        %s1309 = smul.addr %s1308, 8
        %s1310 = scalar_lea.vmem %s9, %s1309
      $region68: #{critic_forward.1} parent=63 // pred_fallthru
        _
    $region64: #{critic_forward.1} parent=5 // pred_fallthru
      _
  $region6: #{critic_forward.1} parent=0 // loop_footer
    %s20 = sadd.s32 1, %s16
  $region7: #{critic_forward.1} parent=0 // loop_footer_branch
    %15 = sbr.rel target = $region3
  $region8: #{critic_forward.1} parent=0 // loop_exit
    _

</llo_original>
